<compile_context>
chip_gen: v7x
topology: tpu7x:2x2x1
jax: 0.10.0
libtpu: 0.0.40
codegen_flags: <defaults>
</compile_context>

<pallas_src>
import functools
import math

import jax
import jax.numpy as jnp
from jax import lax
from jax.experimental import pallas as pl
from jax.experimental.pallas import tpu as pltpu


def _round_up(x, m):
    return ((x + m - 1) // m) * m


# ---------------------------------------------------------------------------
# Pallas kernel: fused (num_param x 1)-conv-as-matmul + BatchNorm(eval) + SiLU
#   a_ref     : (tm, K)     bf16   K = num_param * inc
#   w_ref     : (K, OCp)    bf16   BN scale folded in, OC zero-padded to 128k
#   shift_ref : (1, OCp)    f32    BN shift
#   o_ref     : (tm, OCp)   bf16
# ---------------------------------------------------------------------------
def _ldconv_matmul_bn_silu_kernel(a_ref, w_ref, shift_ref, o_ref):
    acc = jnp.dot(a_ref[...], w_ref[...], preferred_element_type=jnp.float32)
    y = acc + shift_ref[...]                       # BN (scale already folded into W)
    # sigmoid via a single EUP transcendental (tanh) instead of exp + reciprocal.
    sig = 0.5 * (jnp.tanh(0.5 * y) + 1.0)
    o_ref[...] = (y * sig).astype(o_ref.dtype)     # SiLU, stored as bf16


def _vmem_budget_bytes():
    """Generation-aware working-set budget + Mosaic scoped-VMEM limit.
    v5e/v6e: 128 MiB physical -> ~64 MiB budget / 96 MiB limit;
    v7x:      64 MiB physical -> ~32 MiB budget / 48 MiB limit."""
    try:
        cap = int(pltpu.get_tpu_info().vmem_capacity_bytes)
    except Exception:           # no TPU info available -> conservative (v7x-safe)
        cap = 64 << 20
    return cap // 2, (cap * 3) // 4


def _choose_row_tile(R, K, OCp, budget_bytes):
    """Largest row tile whose double-buffered working set fits the per-generation
    VMEM budget, with an even number of grid steps (balanced megacore split on v7x)."""
    Kp = max(128, _round_up(K, 128))               # A columns are lane-padded in VMEM
    # Grid-invariant residents (weight + BN shift). Counted with 2 buffers so the
    # estimate stays safe even if single-buffering is unavailable.
    resident = 2 * (_round_up(K, 16) * OCp * 2 + 8 * OCp * 4)
    avail = max(budget_bytes - resident, 1 << 20)
    per_row = 2 * Kp * 2 + 2 * OCp * 2             # 2x bf16 A buffers + 2x bf16 out buffers
    tm = 2048
    while tm > 128 and tm * per_row > avail:
        tm //= 2
    # >= 2 grid steps when the row count allows it, so ("parallel",) can shard rows
    # across v7x's two TensorCores.
    while tm > 128 and R > 128 and pl.cdiv(R, tm) < 2:
        tm //= 2
    # Even number of grid steps -> even TC split on v7x; harmless on v5e/v6e.
    g = pl.cdiv(R, tm)
    if g > 1 and g % 2 == 1:
        tm = max(8, _round_up(pl.cdiv(R, g + 1), 8))
    return tm


def _grid_invariant_spec(shape):
    """BlockSpec for operands whose index_map is constant across the grid: request
    single buffering (no point double-buffering a block that is DMA'd once)."""
    try:
        return pl.BlockSpec(shape, lambda i: (0, 0), pipeline_mode=pl.Buffered(1))
    except Exception:           # older BlockSpec without pipeline_mode support
        return pl.BlockSpec(shape, lambda i: (0, 0))


def ldconv_conv_bn_silu(a_mat, w_mat, shift_vec):
    """a_mat: (R, K) bf16 (rows = b*h*w), w_mat: (K, OC) f32 (BN scale folded),
    shift_vec: (OC,) f32. Returns (R, OC) bf16."""
    R, K = a_mat.shape
    _, OC = w_mat.shape
    OCp = max(128, _round_up(OC, 128))             # lane-dense output columns
    budget, vmem_limit = _vmem_budget_bytes()
    tm = _choose_row_tile(R, K, OCp, budget)
    grid_m = pl.cdiv(R, tm)                        # no row padding: partial block masked

    a = a_mat if a_mat.dtype == jnp.bfloat16 else a_mat.astype(jnp.bfloat16)
    w = jnp.pad(w_mat, ((0, 0), (0, OCp - OC))).astype(jnp.bfloat16)
    s = jnp.pad(shift_vec.reshape(1, OC), ((0, 0), (0, OCp - OC))).astype(jnp.float32)

    cost = pl.CostEstimate(
        flops=2 * R * K * OCp,
        transcendentals=R * OCp,
        bytes_accessed=a.size * 2 + w.size * 2 + s.size * 4 + R * OCp * 2,
    )

    out = pl.pallas_call(
        _ldconv_matmul_bn_silu_kernel,
        out_shape=jax.ShapeDtypeStruct((R, OCp), jnp.bfloat16),
        grid_spec=pltpu.PrefetchScalarGridSpec(
            num_scalar_prefetch=0,
            grid=(grid_m,),
            in_specs=[
                pl.BlockSpec((tm, K), lambda i: (i, 0)),
                _grid_invariant_spec((K, OCp)),
                _grid_invariant_spec((1, OCp)),
            ],
            out_specs=pl.BlockSpec((tm, OCp), lambda i: (i, 0)),
        ),
        compiler_params=pltpu.CompilerParams(
            dimension_semantics=("parallel",),
            vmem_limit_bytes=int(vmem_limit),
        ),
        cost_estimate=cost,
    )(a, w, s)
    return out[:, :OC]


# ---------------------------------------------------------------------------
# Plain-JAX glue reproducing LDConv's offset grid + bilinear sampling
# ---------------------------------------------------------------------------
def _get_p_n(num_param):
    base_int = round(math.sqrt(num_param))
    row_number = num_param // base_int
    mod_number = num_param % base_int
    xs, ys = jnp.meshgrid(jnp.arange(row_number), jnp.arange(base_int), indexing="ij")
    p_n_x = xs.reshape(-1)
    p_n_y = ys.reshape(-1)
    if mod_number > 0:
        mx, my = jnp.meshgrid(jnp.arange(row_number, row_number + 1),
                              jnp.arange(mod_number), indexing="ij")
        p_n_x = jnp.concatenate([p_n_x, mx.reshape(-1)])
        p_n_y = jnp.concatenate([p_n_y, my.reshape(-1)])
    p_n = jnp.concatenate([p_n_x, p_n_y], axis=0).astype(jnp.float32)
    return p_n.reshape(1, 2 * num_param, 1, 1)


def _get_p_0(h, w, N, stride):
    x0, y0 = jnp.meshgrid(jnp.arange(0, h * stride, stride),
                          jnp.arange(0, w * stride, stride), indexing="ij")
    p_0_x = jnp.broadcast_to(x0.reshape(1, 1, h, w), (1, N, h, w))
    p_0_y = jnp.broadcast_to(y0.reshape(1, 1, h, w), (1, N, h, w))
    return jnp.concatenate([p_0_x, p_0_y], axis=1).astype(jnp.float32)


def _gather_nhwc(x_nhwc, q, N):
    """Channel-last row gather: x_nhwc (b,H,W,c), q (b,h,w,2N) int -> (b,h,w,N,c)."""
    b, H, W, c = x_nhwc.shape
    h, w = q.shape[1], q.shape[2]
    rows = x_nhwc.reshape(b * H * W, c)
    idx = q[..., :N] * W + q[..., N:]                                # (b, h, w, N)
    base = (jnp.arange(b, dtype=idx.dtype) * (H * W)).reshape(b, 1, 1, 1)
    flat = (idx + base).reshape(-1)
    return jnp.take(rows, flat, axis=0).reshape(b, h, w, N, c)


def _build_matmul_operands(x, params, num_param, stride):
    """Returns A (R, num_param*inc) bf16, Wmat_scaled (num_param*inc, outc) f32,
    shift (outc,) f32, and the output shape info (b, h, w, outc)."""
    b, inc, H, W = x.shape

    # p_conv: 3x3 conv, weights == 0 (per module init), bias present.
    offset = lax.conv_general_dilated(
        x, params["p_w"], window_strides=(stride, stride),
        padding=((1, 1), (1, 1)),
        dimension_numbers=("NCHW", "OIHW", "NCHW"),
    ) + params["p_b"][None, :, None, None]

    _, two_n, h, w = offset.shape
    N = two_n // 2

    p = _get_p_0(h, w, N, stride) + _get_p_n(num_param) + offset     # (b, 2N, h, w)
    p = jnp.transpose(p, (0, 2, 3, 1))                               # (b, h, w, 2N)

    q_lt = jnp.floor(p)
    q_rb = q_lt + 1.0
    q_lt = jnp.concatenate([jnp.clip(q_lt[..., :N], 0, H - 1),
                            jnp.clip(q_lt[..., N:], 0, W - 1)], -1).astype(jnp.int32)
    q_rb = jnp.concatenate([jnp.clip(q_rb[..., :N], 0, H - 1),
                            jnp.clip(q_rb[..., N:], 0, W - 1)], -1).astype(jnp.int32)
    q_lb = jnp.concatenate([q_lt[..., :N], q_rb[..., N:]], -1)
    q_rt = jnp.concatenate([q_rb[..., :N], q_lt[..., N:]], -1)

    p = jnp.concatenate([jnp.clip(p[..., :N], 0, H - 1),
                         jnp.clip(p[..., N:], 0, W - 1)], -1)

    f = p.dtype
    g_lt = (1 + (q_lt[..., :N].astype(f) - p[..., :N])) * (1 + (q_lt[..., N:].astype(f) - p[..., N:]))
    g_rb = (1 - (q_rb[..., :N].astype(f) - p[..., :N])) * (1 - (q_rb[..., N:].astype(f) - p[..., N:]))
    g_lb = (1 + (q_lb[..., :N].astype(f) - p[..., :N])) * (1 - (q_lb[..., N:].astype(f) - p[..., N:]))
    g_rt = (1 - (q_rt[..., :N].astype(f) - p[..., :N])) * (1 + (q_rt[..., N:].astype(f) - p[..., N:]))

    # Channel-last gather so A needs no transpose copy before the matmul.
    # TODO(synk): fuse this 4-tap gather + weighted sum into the Pallas kernel.
    x_nhwc = jnp.transpose(x, (0, 2, 3, 1))
    x_q_lt = _gather_nhwc(x_nhwc, q_lt, N)
    x_q_rb = _gather_nhwc(x_nhwc, q_rb, N)
    x_q_lb = _gather_nhwc(x_nhwc, q_lb, N)
    x_q_rt = _gather_nhwc(x_nhwc, q_rt, N)

    x_offset = (g_lt[..., None] * x_q_lt + g_rb[..., None] * x_q_rb
                + g_lb[..., None] * x_q_lb + g_rt[..., None] * x_q_rt)  # (b,h,w,N,c) f32

    # Emit A directly in bf16: the convert fuses with the bilinear weighted-sum, so A
    # hits HBM exactly once, already in the kernel's operand dtype.
    A = x_offset.reshape(b * h * w, num_param * inc).astype(jnp.bfloat16)

    outc = params["conv_w"].shape[0]
    # conv_w: (outc, inc, num_param, 1) -> column order (n outer, c inner) to match A.
    Wmat = params["conv_w"][:, :, :, 0].transpose(0, 2, 1).reshape(outc, num_param * inc).T

    # Eval-mode BatchNorm folded: scale into W, shift passed to the kernel.
    # TODO(synk): PyTorch module in train() mode would use batch statistics; eval-mode BN here.
    eps = 1e-5
    scale_vec = params["bn_gamma"] / jnp.sqrt(params["bn_var"] + eps)
    shift_vec = params["bn_beta"] - params["bn_mean"] * scale_vec
    Wmat_scaled = Wmat * scale_vec[None, :]

    return A, Wmat_scaled, shift_vec, (b, h, w, outc)


def ldconv_forward(x, params, num_param, stride=1, use_pallas=True, channels_last=False):
    A, Wm, shift, (b, h, w, outc) = _build_matmul_operands(x, params, num_param, stride)
    if use_pallas:
        out2 = ldconv_conv_bn_silu(A, Wm, shift)
    else:  # pure-JAX f32 reference path (exact sigmoid) for sanity checking
        y = A.astype(jnp.float32) @ Wm + shift[None, :]
        out2 = y * jax.nn.sigmoid(y)
    out = out2.reshape(b, h, w, outc)
    if channels_last:
        # NHWC output skips the extra HBM transpose pass when downstream allows it.
        return out.astype(jnp.float32)
    # NCHW like the PyTorch module; the f32 convert fuses into the transpose copy.
    return out.transpose(0, 3, 1, 2).astype(jnp.float32)


# ---------------------------------------------------------------------------
# Deterministic parameter construction (module __init__ shapes)
# ---------------------------------------------------------------------------
def make_params(key, inc, outc, num_param):
    ks = jax.random.split(key, 6)
    return {
        # p_conv: Conv2d(inc, 2*num_param, 3, padding=1) -- weight init to 0, bias kept.
        "p_w": jnp.zeros((2 * num_param, inc, 3, 3), jnp.float32),
        "p_b": 0.5 * jax.random.normal(ks[0], (2 * num_param,), jnp.float32),
        # conv: Conv2d(inc, outc, kernel_size=(num_param,1), stride=(num_param,1), bias=None)
        "conv_w": 0.1 * jax.random.normal(ks[1], (outc, inc, num_param, 1), jnp.float32),
        # BatchNorm2d(outc) -- inference-mode stats/affine.
        "bn_gamma": 1.0 + 0.1 * jax.random.normal(ks[2], (outc,), jnp.float32),
        "bn_beta": 0.1 * jax.random.normal(ks[3], (outc,), jnp.float32),
        "bn_mean": 0.1 * jax.random.normal(ks[4], (outc,), jnp.float32),
        "bn_var": 1.0 + 0.1 * jax.random.uniform(ks[5], (outc,), jnp.float32),
    }


if __name__ == "__main__":
    key = jax.random.PRNGKey(0)
    k_x, k_p = jax.random.split(key)

    B, INC, Hs, Ws = 2, 4, 16, 16
    OUTC, NUM_PARAM, STRIDE = 8, 5, 1

    x = jax.random.normal(k_x, (B, INC, Hs, Ws), jnp.float32)   # NCHW, like PyTorch
    params = make_params(k_p, INC, OUTC, NUM_PARAM)

    fwd = jax.jit(functools.partial(ldconv_forward, num_param=NUM_PARAM, stride=STRIDE))
    out = jax.block_until_ready(fwd(x, params))
    assert out.shape == (B, OUTC, Hs, Ws), out.shape

    # Loose sanity check vs a pure-JAX f32 reference (bf16 matmul/store drift).
    ref_fn = jax.jit(functools.partial(ldconv_forward, num_param=NUM_PARAM,
                                       stride=STRIDE, use_pallas=False))
    ref = jax.block_until_ready(ref_fn(x, params))
    max_err = float(jnp.max(jnp.abs(out - ref)))
    assert max_err < 1e-1, f"max |pallas - ref| = {max_err}"

    print("KERNEL_OK")
</pallas_src>

<mosaic_0001>
module attributes {stable_mosaic.version = 11 : i64} {
  func.func @_ldconv_matmul_bn_silu_kernel(%arg0: i32, %arg1: memref<256x20xbf16, #tpu.memory_space<vmem>>, %arg2: memref<20x128xbf16, #tpu.memory_space<vmem>>, %arg3: memref<1x128xf32, #tpu.memory_space<vmem>>, %arg4: memref<256x128xbf16, #tpu.memory_space<vmem>>) attributes {dimension_semantics = [#tpu.dimension_semantics<parallel>], iteration_bounds = array<i64: 2>, scalar_prefetch = 0 : i64, scratch_operands = 0 : i64, tpu.core_type = #tpu.core_type<tc>, window_params = [{transform_indices = @transform_0, window_bounds = array<i64: 256, 20>}, {pipeline_mode = #tpu.pipeline_mode<synchronous>, transform_indices = @transform_1, window_bounds = array<i64: 20, 128>}, {pipeline_mode = #tpu.pipeline_mode<synchronous>, transform_indices = @transform_2, window_bounds = array<i64: 1, 128>}, {transform_indices = @transform_3, window_bounds = array<i64: 256, 128>}]} {
    %c0 = arith.constant 0 : index
    %c0_0 = arith.constant 0 : index
    %0 = vector.load %arg1[%c0, %c0_0] : memref<256x20xbf16, #tpu.memory_space<vmem>>, vector<256x20xbf16>
    %c0_1 = arith.constant 0 : index
    %c0_2 = arith.constant 0 : index
    %1 = vector.load %arg2[%c0_1, %c0_2] : memref<20x128xbf16, #tpu.memory_space<vmem>>, vector<20x128xbf16>
    %cst = arith.constant dense<0.000000e+00> : vector<256x128xf32>
    %2 = tpu.matmul %0, %1, %cst {dimension_numbers = #tpu.dot_dimension_numbers<[1], [0], [0], [1], [0, 0, 1, 1], [], []>} : vector<256x20xbf16>, vector<20x128xbf16>, vector<256x128xf32> -> vector<256x128xf32>
    %c0_3 = arith.constant 0 : index
    %c0_4 = arith.constant 0 : index
    %3 = vector.load %arg3[%c0_3, %c0_4] : memref<1x128xf32, #tpu.memory_space<vmem>>, vector<1x128xf32>
    %4 = vector.broadcast %3 : vector<1x128xf32> to vector<256x128xf32>
    %5 = arith.addf %2, %4 : vector<256x128xf32>
    %cst_5 = arith.constant 5.000000e-01 : f32
    %6 = vector.broadcast %cst_5 : f32 to vector<256x128xf32>
    %7 = arith.mulf %6, %5 : vector<256x128xf32>
    %8 = math.tanh %7 : vector<256x128xf32>
    %cst_6 = arith.constant 1.000000e+00 : f32
    %9 = vector.broadcast %cst_6 : f32 to vector<256x128xf32>
    %10 = arith.addf %8, %9 : vector<256x128xf32>
    %cst_7 = arith.constant 5.000000e-01 : f32
    %11 = vector.broadcast %cst_7 : f32 to vector<256x128xf32>
    %12 = arith.mulf %11, %10 : vector<256x128xf32>
    %13 = arith.mulf %5, %12 : vector<256x128xf32>
    %14 = arith.truncf %13 : vector<256x128xf32> to vector<256x128xbf16>
    %c0_8 = arith.constant 0 : index
    %c0_9 = arith.constant 0 : index
    %15 = vector.load %arg4[%c0_8, %c0_9] : memref<256x128xbf16, #tpu.memory_space<vmem>>, vector<256x128xbf16>
    tpu.vector_store %arg4[%c0_8, %c0_9], %14 {strides = array<i32>} : memref<256x128xbf16, #tpu.memory_space<vmem>>, vector<256x128xbf16>,
    return
  }
  func.func @transform_0(%arg0: i32) -> (i32, i32) {
    %c0_i32 = arith.constant 0 : i32
    %c0_i32_0 = arith.constant 0 : i32
    return %arg0, %c0_i32 : i32, i32
  }
  func.func @transform_1(%arg0: i32) -> (i32, i32) {
    %c0_i32 = arith.constant 0 : i32
    %c0_i32_0 = arith.constant 0 : i32
    %c0_i32_1 = arith.constant 0 : i32
    return %c0_i32, %c0_i32_0 : i32, i32
  }
  func.func @transform_2(%arg0: i32) -> (i32, i32) {
    %c0_i32 = arith.constant 0 : i32
    %c0_i32_0 = arith.constant 0 : i32
    %c0_i32_1 = arith.constant 0 : i32
    return %c0_i32, %c0_i32_0 : i32, i32
  }
  func.func @transform_3(%arg0: i32) -> (i32, i32) {
    %c0_i32 = arith.constant 0 : i32
    %c0_i32_0 = arith.constant 0 : i32
    return %arg0, %c0_i32 : i32, i32
  }
}

</mosaic_0001>

<llo_original>
// kernel: mul.1
$region0: #{mul.1}
  #allocation0 [shape = 's32[1]{0}', space=sflag, size = 0x4, scoped, tag = 'scoped memory for mul.1']
  %s0 = inlined_call_operand.vmem [shape: f32[512,20], index: 0, kind: input, shape index: {}]
  %s1 = inlined_call_operand.vmem [shape: f32[512,20], index: 1, kind: input, shape index: {}]
  %s2 = inlined_call_operand.vmem [shape: f32[512,20], index: 2, kind: output, shape index: {}]
  %v3 = vld [vmem:[%s0] sm:$0xff]
  %v4 = vld [vmem:[%s1] sm:$0xff]
  %5 = xla_tuple %v3, %v4
  %6 = xla_tuple %5
  %v7 = vmul.f32 %v3, %v4
  %8 = xla_tuple %v7
  %9 = vst [vmem:[%s2] sm:$0xff] %v7
  %s10 = scalar_lea.vmem %s0, 32
  %v11 = vld [vmem:[%s10] sm:$0xff]
  %s12 = scalar_lea.vmem %s1, 32
  %v13 = vld [vmem:[%s12] sm:$0xff]
  %14 = xla_tuple %v11, %v13
  %15 = xla_tuple %14
  %v16 = vmul.f32 %v11, %v13
  %17 = xla_tuple %v16
  %s18 = scalar_lea.vmem %s2, 32
  %19 = vst [vmem:[%s18] sm:$0xff] %v16
  %s20 = scalar_lea.vmem %s0, 64
  %v21 = vld [vmem:[%s20] sm:$0xff]
  %s22 = scalar_lea.vmem %s1, 64
  %v23 = vld [vmem:[%s22] sm:$0xff]
  %24 = xla_tuple %v21, %v23
  %25 = xla_tuple %24
  %v26 = vmul.f32 %v21, %v23
  %27 = xla_tuple %v26
  %s28 = scalar_lea.vmem %s2, 64
  %29 = vst [vmem:[%s28] sm:$0xff] %v26
  %s30 = scalar_lea.vmem %s0, 8
  %v31 = vld [vmem:[%s30] sm:$0xff]
  %s32 = scalar_lea.vmem %s1, 8
  %v33 = vld [vmem:[%s32] sm:$0xff]
  %34 = xla_tuple %v31, %v33
  %35 = xla_tuple %34
  %v36 = vmul.f32 %v31, %v33
  %37 = xla_tuple %v36
  %s38 = scalar_lea.vmem %s2, 8
  %39 = vst [vmem:[%s38] sm:$0xff] %v36
  %s40 = scalar_lea.vmem %s0, 40
  %v41 = vld [vmem:[%s40] sm:$0xff]
  %s42 = scalar_lea.vmem %s1, 40
  %v43 = vld [vmem:[%s42] sm:$0xff]
  %44 = xla_tuple %v41, %v43
  %45 = xla_tuple %44
  %v46 = vmul.f32 %v41, %v43
  %47 = xla_tuple %v46
  %s48 = scalar_lea.vmem %s2, 40
  %49 = vst [vmem:[%s48] sm:$0xff] %v46
  %s50 = scalar_lea.vmem %s0, 72
  %v51 = vld [vmem:[%s50] sm:$0xff]
  %s52 = scalar_lea.vmem %s1, 72
  %v53 = vld [vmem:[%s52] sm:$0xff]
  %54 = xla_tuple %v51, %v53
  %55 = xla_tuple %54
  %v56 = vmul.f32 %v51, %v53
  %57 = xla_tuple %v56
  %s58 = scalar_lea.vmem %s2, 72
  %59 = vst [vmem:[%s58] sm:$0xff] %v56
  %s60 = scalar_lea.vmem %s0, 16
  %v61 = vld [vmem:[%s60] sm:$0xff]
  %s62 = scalar_lea.vmem %s1, 16
  %v63 = vld [vmem:[%s62] sm:$0xff]
  %64 = xla_tuple %v61, %v63
  %65 = xla_tuple %64
  %v66 = vmul.f32 %v61, %v63
  %67 = xla_tuple %v66
  %s68 = scalar_lea.vmem %s2, 16
  %69 = vst [vmem:[%s68] sm:$0xff] %v66
  %s70 = scalar_lea.vmem %s0, 48
  %v71 = vld [vmem:[%s70] sm:$0xff]
  %s72 = scalar_lea.vmem %s1, 48
  %v73 = vld [vmem:[%s72] sm:$0xff]
  %74 = xla_tuple %v71, %v73
  %75 = xla_tuple %74
  %v76 = vmul.f32 %v71, %v73
  %77 = xla_tuple %v76
  %s78 = scalar_lea.vmem %s2, 48
  %79 = vst [vmem:[%s78] sm:$0xff] %v76
  %s80 = scalar_lea.vmem %s0, 80
  %v81 = vld [vmem:[%s80] sm:$0xff]
  %s82 = scalar_lea.vmem %s1, 80
  %v83 = vld [vmem:[%s82] sm:$0xff]
  %84 = xla_tuple %v81, %v83
  %85 = xla_tuple %84
  %v86 = vmul.f32 %v81, %v83
  %87 = xla_tuple %v86
  %s88 = scalar_lea.vmem %s2, 80
  %89 = vst [vmem:[%s88] sm:$0xff] %v86
  %s90 = scalar_lea.vmem %s0, 24
  %v91 = vld [vmem:[%s90] sm:$0xff]
  %s92 = scalar_lea.vmem %s1, 24
  %v93 = vld [vmem:[%s92] sm:$0xff]
  %94 = xla_tuple %v91, %v93
  %95 = xla_tuple %94
  %v96 = vmul.f32 %v91, %v93
  %97 = xla_tuple %v96
  %s98 = scalar_lea.vmem %s2, 24
  %99 = vst [vmem:[%s98] sm:$0xff] %v96
  %s100 = scalar_lea.vmem %s0, 56
  %v101 = vld [vmem:[%s100] sm:$0xff]
  %s102 = scalar_lea.vmem %s1, 56
  %v103 = vld [vmem:[%s102] sm:$0xff]
  %104 = xla_tuple %v101, %v103
  %105 = xla_tuple %104
  %v106 = vmul.f32 %v101, %v103
  %107 = xla_tuple %v106
  %s108 = scalar_lea.vmem %s2, 56
  %109 = vst [vmem:[%s108] sm:$0xff] %v106
  %s110 = scalar_lea.vmem %s0, 88
  %v111 = vld [vmem:[%s110] sm:$0xff]
  %s112 = scalar_lea.vmem %s1, 88
  %v113 = vld [vmem:[%s112] sm:$0xff]
  %114 = xla_tuple %v111, %v113
  %115 = xla_tuple %114
  %v116 = vmul.f32 %v111, %v113
  %117 = xla_tuple %v116
  %s118 = scalar_lea.vmem %s2, 88
  %119 = vst [vmem:[%s118] sm:$0xff] %v116

// kernel: ldconv_forward.1
$region0: #{ldconv_forward.1}
  #allocation0 [shape = 'u32[]', space=smem, size = 0x4, offset = 0x4, fixed_abs, tag = 'smem constant byte address 0x4 - core index']
  #allocation1 [shape = 'u32[144,128]{1,0:T(1,128)}', space=vmem, size = 0x12000, scoped, tag = 'internal scratch']
  %s0 = inlined_call_operand.vmem [shape: bf16[512,20], index: 0, kind: input, shape index: {}]
  %s1 = inlined_call_operand.vmem [shape: bf16[20,128], index: 1, kind: input, shape index: {}]
  %s2 = inlined_call_operand.vmem [shape: f32[1,128], index: 2, kind: input, shape index: {}]
  %s3 = inlined_call_operand.vmem [shape: bf16[512,128], index: 3, kind: output, shape index: {}]
  %s4 = sld [smem:[#allocation0]]
  $region45: #{ldconv_forward.1} parent=0
    _
  %s6 = ssub.s32 1, %s4
  %s7 = scalar_select 0, %s6, %s4
  loop: start=0, step=1, limit=4
  $region2: #{ldconv_forward.1} parent=0 // loop_pre_header
    _
  $region3: #{ldconv_forward.1} parent=0 // loop_header
    %s9 = sphi 0, %s13
    %p10 = scmp.ge.s32.totalorder %s9, 4
    %s19 = sphi 0, %s21
    %s22 = sphi 0, %s19
    %s23 = sphi 0, %s22
    %s39 = sphi 0, %s23
    %s43 = sphi 0, %s43
    %s45 = sphi 0, %s43
    %s46 = sphi 0, %s45
    %s60 = sphi 0, %s46
    %s64 = sphi 0, %s64
    %s66 = sphi 0, %s64
    %s67 = sphi 0, %s66
    %s81 = sphi 0, %s67
    %s87 = sphi 0, %s89
    %s90 = sphi 0, %s87
    %s91 = sphi 0, %s90
    %s107 = sphi 0, %s91
  $region4: #{ldconv_forward.1} parent=0 // loop_header_branch
    %12 = sbr.rel (%p10) target = $region8
  $region5: #{ldconv_forward.1} parent=0 // loop_body
    %s14 = ssub.s32 %s9, 1
    %s15 = ssub.s32 %s9, 2
    %s16 = sadd.s32 %s9, 1
    %s17 = ssub.s32 %s9, %s16
    %p18 = scmp.eq.s32.totalorder %s17, 0
    %s20 = sadd.s32 %s19, 1
    %s21 = scalar_select %p18, %s19, %s20
    %p24 = pneg %p18
    %p25 = scmp.eq.s32.totalorder %s9, 1
    %p26 = por %p24, %p25
    %p27 = scmp.ne.s32.totalorder %s19, %s22
    %p28 = scmp.eq.s32.totalorder %s9, 0
    %p29 = por %p27, %p28
    %p30 = scmp.ne.s32.totalorder %s19, %s22
    %p31 = scmp.eq.s32.totalorder %s14, 1
    %p32 = por %p30, %p31
    %p33 = scmp.ne.s32.totalorder %s22, %s23
    %p34 = scmp.eq.s32.totalorder %s14, 0
    %p35 = por %p33, %p34
    %p36 = scmp.ne.s32.totalorder %s22, %s23
    %p37 = scmp.eq.s32.totalorder %s15, 1
    %p38 = por %p36, %p37
    %p40 = scmp.ne.s32.totalorder %s23, %s39
    %p41 = scmp.eq.s32.totalorder %s15, 0
    %p42 = por %p40, %p41
    %s44 = sadd.s32 %s43, 1
    %p47 = scmp.eq.s32.totalorder %s9, 1
    %p48 = scmp.ne.s32.totalorder %s43, %s45
    %p49 = scmp.eq.s32.totalorder %s9, 0
    %p50 = por %p48, %p49
    %p51 = scmp.ne.s32.totalorder %s43, %s45
    %p52 = scmp.eq.s32.totalorder %s14, 1
    %p53 = por %p51, %p52
    %p54 = scmp.ne.s32.totalorder %s45, %s46
    %p55 = scmp.eq.s32.totalorder %s14, 0
    %p56 = por %p54, %p55
    %p57 = scmp.ne.s32.totalorder %s45, %s46
    %p58 = scmp.eq.s32.totalorder %s15, 1
    %p59 = por %p57, %p58
    %p61 = scmp.ne.s32.totalorder %s46, %s60
    %p62 = scmp.eq.s32.totalorder %s15, 0
    %p63 = por %p61, %p62
    %s65 = sadd.s32 %s64, 1
    %p68 = scmp.eq.s32.totalorder %s9, 1
    %p69 = scmp.ne.s32.totalorder %s64, %s66
    %p70 = scmp.eq.s32.totalorder %s9, 0
    %p71 = por %p69, %p70
    %p72 = scmp.ne.s32.totalorder %s64, %s66
    %p73 = scmp.eq.s32.totalorder %s14, 1
    %p74 = por %p72, %p73
    %p75 = scmp.ne.s32.totalorder %s66, %s67
    %p76 = scmp.eq.s32.totalorder %s14, 0
    %p77 = por %p75, %p76
    %p78 = scmp.ne.s32.totalorder %s66, %s67
    %p79 = scmp.eq.s32.totalorder %s15, 1
    %p80 = por %p78, %p79
    %p82 = scmp.ne.s32.totalorder %s67, %s81
    %p83 = scmp.eq.s32.totalorder %s15, 0
    %p84 = por %p82, %p83
    %s85 = ssub.s32 %s9, %s16
    %p86 = scmp.eq.s32.totalorder %s85, 0
    %s88 = sadd.s32 %s87, 1
    %s89 = scalar_select %p86, %s87, %s88
    %p92 = pneg %p86
    %p93 = scmp.eq.s32.totalorder %s9, 1
    %p94 = por %p92, %p93
    %p95 = scmp.ne.s32.totalorder %s87, %s90
    %p96 = scmp.eq.s32.totalorder %s9, 0
    %p97 = por %p95, %p96
    %p98 = scmp.ne.s32.totalorder %s87, %s90
    %p99 = scmp.eq.s32.totalorder %s14, 1
    %p100 = por %p98, %p99
    %p101 = scmp.ne.s32.totalorder %s90, %s91
    %p102 = scmp.eq.s32.totalorder %s14, 0
    %p103 = por %p101, %p102
    %p104 = scmp.ne.s32.totalorder %s90, %s91
    %p105 = scmp.eq.s32.totalorder %s15, 1
    %p106 = por %p104, %p105
    %p108 = scmp.ne.s32.totalorder %s91, %s107
    %p109 = scmp.eq.s32.totalorder %s15, 0
    %p110 = por %p108, %p109
    %p111 = scmp.le.s32.totalorder 1, %s9
    %p112 = scmp.lt.s32.totalorder %s9, 3
    %p113 = pnand %p111, %p112
    %p114 = pneg %p113
    // Predicated region
    $region9: #{ldconv_forward.1} parent=5 // pred_check
      _
    $region10: #{ldconv_forward.1} parent=5 // pred_check_branch
      %116 = sbr.rel (%p113) target = $region12
    $region11: #{ldconv_forward.1} parent=5 // pred_region
      %s117 = ssub.s32 %s9, 1
      // Predicated region
      $region13: #{ldconv_forward.1} parent=11 // pred_check
        %p118 = pneg %p56
      $region14: #{ldconv_forward.1} parent=11 // pred_check_branch
        %120 = sbr.rel (%p118) target = $region16
      $region15: #{ldconv_forward.1} parent=11 // pred_region
        _
      $region16: #{ldconv_forward.1} parent=11 // pred_fallthru
        _
      // Predicated region
      $region17: #{ldconv_forward.1} parent=11 // pred_check
        %p121 = pneg %p77
      $region18: #{ldconv_forward.1} parent=11 // pred_check_branch
        %123 = sbr.rel (%p121) target = $region20
      $region19: #{ldconv_forward.1} parent=11 // pred_region
        _
      $region20: #{ldconv_forward.1} parent=11 // pred_fallthru
        _
    $region12: #{ldconv_forward.1} parent=5 // pred_fallthru
      _
    %p124 = scmp.lt.s32.totalorder %s9, 2
    // Predicated region
    $region21: #{ldconv_forward.1} parent=5 // pred_check
      %p125 = pneg %p124
    $region22: #{ldconv_forward.1} parent=5 // pred_check_branch
      %127 = sbr.rel (%p125) target = $region24
    $region23: #{ldconv_forward.1} parent=5 // pred_region
      // Predicated region
      $region25: #{ldconv_forward.1} parent=23 // pred_check
        %p128 = pneg %p29
      $region26: #{ldconv_forward.1} parent=23 // pred_check_branch
        %130 = sbr.rel (%p128) target = $region28
      $region27: #{ldconv_forward.1} parent=23 // pred_region
        %s131 = smul.u32 32, %s9
        %p132 = scmp.lt.s32.totalorder %s131, 63
        %s133 = scalar_select %p132, %s131, 63
        %s134 = smul.addr %s133, 4
        %s135 = scalar_lea.vmem %s0, %s134
        %s136 = smul.u32 32, %s9
      $region28: #{ldconv_forward.1} parent=23 // pred_fallthru
        _
    $region24: #{ldconv_forward.1} parent=5 // pred_fallthru
      _
    %p137 = scmp.le.s32.totalorder 1, %s9
    %p138 = scmp.lt.s32.totalorder %s9, 3
    %p139 = pnand %p137, %p138
    %p140 = pneg %p139
    // Predicated region
    $region29: #{ldconv_forward.1} parent=5 // pred_check
      _
    $region30: #{ldconv_forward.1} parent=5 // pred_check_branch
      %142 = sbr.rel (%p139) target = $region32
    $region31: #{ldconv_forward.1} parent=5 // pred_region
      %s143 = ssub.s32 %s9, 1
      %s144 = smul.u32 32, %s14
      %p145 = scmp.lt.s32.totalorder %s144, 63
      %s146 = scalar_select %p145, %s144, 63
      %s147 = smul.addr %s146, 4
      %s148 = scalar_lea.vmem %s0, %s147
      %p149 = pneg %p35
      %p150 = pneg %p32
      %p151 = pneg %p56
      %p152 = pneg %p53
      %p153 = pneg %p77
      %p154 = pneg %p74
      %p155 = pneg %p103
      %p156 = pneg %p100
      %s157 = smul.u32 32, %s14
      %p158 = scmp.lt.s32.totalorder %s157, 63
      %s159 = scalar_select %p158, %s157, 63
      %s160 = smul.addr %s159, 4
      %s161 = scalar_lea.vmem %s3, %s160
      %s162 = smul.u32 32, %s14
      %p163 = scmp.lt.s32.totalorder %s162, 63
      %s164 = scalar_select %p163, %s162, 63
      %s165 = smul.addr %s164, 4
      %s166 = scalar_lea.vmem %s0, %s165
      %s167 = smul.u32 32, %s14
      %s168 = smul.u32 32, %s14
      %p169 = scmp.lt.s32.totalorder %s168, 63
      %s170 = scalar_select %p169, %s168, 63
      %s171 = smul.addr %s170, 4
      %s172 = scalar_lea.vmem %s3, %s171
      %s173 = smul.u32 32, %s14
      %v175 = vld [vmem:[%s166] sm:$0xf]
      %v176 = vld [vmem:[%s166 + $0x4] sm:$0xf]
      %v177 = vld [vmem:[%s166 + $0x8] sm:$0xf]
      %v178 = vld [vmem:[%s166 + $0xc] sm:$0xf]
      %v179 = vld [vmem:[%s166 + $0x10] sm:$0xf]
      %v180 = vld [vmem:[%s166 + $0x14] sm:$0xf]
      %v181 = vld [vmem:[%s166 + $0x18] sm:$0xf]
      %v182 = vld [vmem:[%s166 + $0x1c] sm:$0xf]
      %v183 = vld [vmem:[%s166 + $0x20] sm:$0xf]
      %v184 = vld [vmem:[%s166 + $0x24] sm:$0xf]
      %v185 = vld [vmem:[%s166 + $0x28] sm:$0xf]
      %v186 = vld [vmem:[%s166 + $0x2c] sm:$0xf]
      %v187 = vld [vmem:[%s166 + $0x30] sm:$0xf]
      %v188 = vld [vmem:[%s166 + $0x34] sm:$0xf]
      %v189 = vld [vmem:[%s166 + $0x38] sm:$0xf]
      %v190 = vld [vmem:[%s166 + $0x3c] sm:$0xf]
      %v191 = vld [vmem:[%s166 + $0x40] sm:$0xf]
      %v192 = vld [vmem:[%s166 + $0x44] sm:$0xf]
      %v193 = vld [vmem:[%s166 + $0x48] sm:$0xf]
      %v194 = vld [vmem:[%s166 + $0x4c] sm:$0xf]
      %v195 = vld [vmem:[%s166 + $0x50] sm:$0xf]
      %v196 = vld [vmem:[%s166 + $0x54] sm:$0xf]
      %v197 = vld [vmem:[%s166 + $0x58] sm:$0xf]
      %v198 = vld [vmem:[%s166 + $0x5c] sm:$0xf]
      %v199 = vld [vmem:[%s166 + $0x60] sm:$0xf]
      %v200 = vld [vmem:[%s166 + $0x64] sm:$0xf]
      %v201 = vld [vmem:[%s166 + $0x68] sm:$0xf]
      %v202 = vld [vmem:[%s166 + $0x6c] sm:$0xf]
      %v203 = vld [vmem:[%s166 + $0x70] sm:$0xf]
      %v204 = vld [vmem:[%s166 + $0x74] sm:$0xf]
      %v205 = vld [vmem:[%s166 + $0x78] sm:$0xf]
      %v206 = vld [vmem:[%s166 + $0x7c] sm:$0xf]
      %v207 = vld [vmem:[%s1] sm:$0xf]
      %v208 = vld [vmem:[%s1 + $0x4] sm:$0xf]
      %v209 = vld [vmem:[%s1 + $0x8] sm:$0x3]
      %v210 = vld [vmem:[%s2] sm:$0x1]
      %v212 = vlaneseq
      %v213 = vshrl.u32 %v212, 7
      %v214 = vsub.s32 0, %v213
      %v215 = vrot.slane %v210, %v214
      %v249 = vunpack.c.l.b16 %v175
      %v250 = vunpack.c.l.b16 %v176
      %v251 = vunpack.c.l.b16 %v177
      %v252 = vunpack.c.l.b16 %v178
      %v253 = vunpack.c.l.b16 %v179
      %v254 = vunpack.c.l.b16 %v180
      %v255 = vunpack.c.l.b16 %v181
      %v256 = vunpack.c.l.b16 %v182
      %v257 = vunpack.c.l.b16 %v183
      %v258 = vunpack.c.l.b16 %v184
      %v259 = vunpack.c.l.b16 %v185
      %v260 = vunpack.c.l.b16 %v186
      %v261 = vunpack.c.l.b16 %v187
      %v262 = vunpack.c.l.b16 %v188
      %v263 = vunpack.c.l.b16 %v189
      %v264 = vunpack.c.l.b16 %v190
      %v265 = vunpack.c.l.b16 %v191
      %v266 = vunpack.c.l.b16 %v192
      %v267 = vunpack.c.l.b16 %v193
      %v268 = vunpack.c.l.b16 %v194
      %v269 = vunpack.c.l.b16 %v195
      %v270 = vunpack.c.l.b16 %v196
      %v271 = vunpack.c.l.b16 %v197
      %v272 = vunpack.c.l.b16 %v198
      %v273 = vunpack.c.l.b16 %v199
      %v274 = vunpack.c.l.b16 %v200
      %v275 = vunpack.c.l.b16 %v201
      %v276 = vunpack.c.l.b16 %v202
      %v277 = vunpack.c.l.b16 %v203
      %v278 = vunpack.c.l.b16 %v204
      %v279 = vunpack.c.l.b16 %v205
      %v280 = vunpack.c.l.b16 %v206
      %v281 = vpack.c.b16 %v250, %v249
      %v282 = vpack.c.b16 %v252, %v251
      %v283 = vpack.c.b16 %v254, %v253
      %v284 = vpack.c.b16 %v256, %v255
      %v285 = vpack.c.b16 %v258, %v257
      %v286 = vpack.c.b16 %v260, %v259
      %v287 = vpack.c.b16 %v262, %v261
      %v288 = vpack.c.b16 %v264, %v263
      %v289 = vpack.c.b16 %v266, %v265
      %v290 = vpack.c.b16 %v268, %v267
      %v291 = vpack.c.b16 %v270, %v269
      %v292 = vpack.c.b16 %v272, %v271
      %v293 = vpack.c.b16 %v274, %v273
      %v294 = vpack.c.b16 %v276, %v275
      %v295 = vpack.c.b16 %v278, %v277
      %v296 = vpack.c.b16 %v280, %v279
      %v300 = vunpack.c.l.b16 %v207
      %v301 = vunpack.c.l.b16 %v208
      %v302 = vunpack.c.l.b16 %v209
      %v303 = vpack.c.b16 %v301, %v300
      %v304 = vpack.c.b16 %v302, %v302
      %vm306 = vcmask 162816
      %v308 = vsel %vm306, %v281, 0
      %v311 = vsel %vm306, %v282, 0
      %v314 = vsel %vm306, %v283, 0
      %v317 = vsel %vm306, %v284, 0
      %v320 = vsel %vm306, %v285, 0
      %v323 = vsel %vm306, %v286, 0
      %v326 = vsel %vm306, %v287, 0
      %v329 = vsel %vm306, %v288, 0
      %v332 = vsel %vm306, %v289, 0
      %v335 = vsel %vm306, %v290, 0
      %v338 = vsel %vm306, %v291, 0
      %v341 = vsel %vm306, %v292, 0
      %v344 = vsel %vm306, %v293, 0
      %v347 = vsel %vm306, %v294, 0
      %v350 = vsel %vm306, %v295, 0
      %v353 = vsel %vm306, %v296, 0
      %vm355 = vcmask 1041408
      %v357 = vsel %vm355, %v304, 0
      %359 = vmatprep.subr.bf16.mxu0 0
      %360 = vmatpush1.bf16.msra.mxu0 %v303
      %361 = vmatprep.subr.bf16.mxu0 0
      %362 = vmatpush1.bf16.msra.mxu0 %v357
      %363 = vmatprep.subr.bf16.mxu0 0
      %364 = vmatpush1.bf16.msra.mxu0 0
      %365 = vmatprep.subr.bf16.mxu0 0
      %366 = vmatpush1.bf16.msra.mxu0 0
      %367 = vmatprep.subr.bf16.mxu0 0
      %368 = vmatpush1.bf16.msra.mxu0 0
      %369 = vmatprep.subr.bf16.mxu0 0
      %370 = vmatpush1.bf16.msra.mxu0 0
      %371 = vmatprep.subr.bf16.mxu0 0
      %372 = vmatpush1.bf16.msra.mxu0 0
      %373 = vmatprep.subr.bf16.mxu0 0
      %374 = vmatpush1.bf16.msra.mxu0 0
      %375 = vmatprep.subr.bf16.mxu0 0
      %376 = vmatpush1.bf16.msra.mxu0 0
      %377 = vmatprep.subr.bf16.mxu0 0
      %378 = vmatpush1.bf16.msra.mxu0 0
      %379 = vmatprep.subr.bf16.mxu0 0
      %380 = vmatpush1.bf16.msra.mxu0 0
      %381 = vmatprep.subr.bf16.mxu0 0
      %382 = vmatpush1.bf16.msra.mxu0 0
      %383 = vmatprep.subr.bf16.mxu0 0
      %384 = vmatpush1.bf16.msra.mxu0 0
      %385 = vmatprep.subr.bf16.mxu0 0
      %386 = vmatpush1.bf16.msra.mxu0 0
      %387 = vmatprep.subr.bf16.mxu0 0
      %388 = vmatpush1.bf16.msra.mxu0 0
      %389 = vmatprep.subr.bf16.mxu0 0
      %390 = vmatpush1.bf16.msra.mxu0 0
      %391 = vmatprep.mubr.bf16.mxu0 0
      %392 = vmatmul.mubr.bf16.gmra.mrb[0].mxu0 %v308
      %v393 = vpop.f32.mrb[0].mxu0
      %v394 = vadd.f32 %v215, %v393
      %v395 = vpop.f32.mrb[0].mxu0
      %v396 = vpop.f32.mrb[0].mxu0
      %v397 = vadd.f32 %v215, %v396
      %v398 = vpop.f32.mrb[0].mxu0
      %399 = vmatprep.mubr.bf16.mxu0 0
      %400 = vmatmul.mubr.bf16.gmra.mrb[0].mxu0 %v311
      %v401 = vpop.f32.mrb[0].mxu0
      %v402 = vadd.f32 %v215, %v401
      %v403 = vpop.f32.mrb[0].mxu0
      %v404 = vpop.f32.mrb[0].mxu0
      %v405 = vadd.f32 %v215, %v404
      %v406 = vpop.f32.mrb[0].mxu0
      %407 = vmatprep.mubr.bf16.mxu0 0
      %408 = vmatmul.mubr.bf16.gmra.mrb[0].mxu0 %v314
      %v409 = vpop.f32.mrb[0].mxu0
      %v410 = vadd.f32 %v215, %v409
      %v411 = vpop.f32.mrb[0].mxu0
      %v412 = vpop.f32.mrb[0].mxu0
      %v413 = vadd.f32 %v215, %v412
      %v414 = vpop.f32.mrb[0].mxu0
      %415 = vmatprep.mubr.bf16.mxu0 0
      %416 = vmatmul.mubr.bf16.gmra.mrb[0].mxu0 %v317
      %v417 = vpop.f32.mrb[0].mxu0
      %v418 = vadd.f32 %v215, %v417
      %v419 = vpop.f32.mrb[0].mxu0
      %v420 = vpop.f32.mrb[0].mxu0
      %v421 = vadd.f32 %v215, %v420
      %v422 = vpop.f32.mrb[0].mxu0
      %423 = vmatprep.mubr.bf16.mxu0 0
      %424 = vmatmul.mubr.bf16.gmra.mrb[0].mxu0 %v320
      %v425 = vpop.f32.mrb[0].mxu0
      %v426 = vadd.f32 %v215, %v425
      %v427 = vpop.f32.mrb[0].mxu0
      %v428 = vpop.f32.mrb[0].mxu0
      %v429 = vadd.f32 %v215, %v428
      %v430 = vpop.f32.mrb[0].mxu0
      %431 = vmatprep.mubr.bf16.mxu0 0
      %432 = vmatmul.mubr.bf16.gmra.mrb[0].mxu0 %v323
      %v433 = vpop.f32.mrb[0].mxu0
      %v434 = vadd.f32 %v215, %v433
      %v435 = vpop.f32.mrb[0].mxu0
      %v436 = vpop.f32.mrb[0].mxu0
      %v437 = vadd.f32 %v215, %v436
      %v438 = vpop.f32.mrb[0].mxu0
      %439 = vmatprep.mubr.bf16.mxu0 0
      %440 = vmatmul.mubr.bf16.gmra.mrb[0].mxu0 %v326
      %v441 = vpop.f32.mrb[0].mxu0
      %v442 = vadd.f32 %v215, %v441
      %v443 = vpop.f32.mrb[0].mxu0
      %v444 = vpop.f32.mrb[0].mxu0
      %v445 = vadd.f32 %v215, %v444
      %v446 = vpop.f32.mrb[0].mxu0
      %447 = vmatprep.mubr.bf16.mxu0 0
      %448 = vmatmul.mubr.bf16.gmra.mrb[0].mxu0 %v329
      %v449 = vpop.f32.mrb[0].mxu0
      %v450 = vadd.f32 %v215, %v449
      %v451 = vpop.f32.mrb[0].mxu0
      %v452 = vpop.f32.mrb[0].mxu0
      %v453 = vadd.f32 %v215, %v452
      %v454 = vpop.f32.mrb[0].mxu0
      %455 = vmatprep.mubr.bf16.mxu0 0
      %456 = vmatmul.mubr.bf16.gmra.mrb[0].mxu0 %v332
      %v457 = vpop.f32.mrb[0].mxu0
      %v458 = vadd.f32 %v215, %v457
      %v459 = vpop.f32.mrb[0].mxu0
      %v460 = vpop.f32.mrb[0].mxu0
      %v461 = vadd.f32 %v215, %v460
      %v462 = vpop.f32.mrb[0].mxu0
      %463 = vmatprep.mubr.bf16.mxu0 0
      %464 = vmatmul.mubr.bf16.gmra.mrb[0].mxu0 %v335
      %v465 = vpop.f32.mrb[0].mxu0
      %v466 = vadd.f32 %v215, %v465
      %v467 = vpop.f32.mrb[0].mxu0
      %v468 = vpop.f32.mrb[0].mxu0
      %v469 = vadd.f32 %v215, %v468
      %v470 = vpop.f32.mrb[0].mxu0
      %471 = vmatprep.mubr.bf16.mxu0 0
      %472 = vmatmul.mubr.bf16.gmra.mrb[0].mxu0 %v338
      %v473 = vpop.f32.mrb[0].mxu0
      %v474 = vadd.f32 %v215, %v473
      %v475 = vpop.f32.mrb[0].mxu0
      %v476 = vpop.f32.mrb[0].mxu0
      %v477 = vadd.f32 %v215, %v476
      %v478 = vpop.f32.mrb[0].mxu0
      %479 = vmatprep.mubr.bf16.mxu0 0
      %480 = vmatmul.mubr.bf16.gmra.mrb[0].mxu0 %v341
      %v481 = vpop.f32.mrb[0].mxu0
      %v482 = vadd.f32 %v215, %v481
      %v483 = vpop.f32.mrb[0].mxu0
      %v484 = vpop.f32.mrb[0].mxu0
      %v485 = vadd.f32 %v215, %v484
      %v486 = vpop.f32.mrb[0].mxu0
      %487 = vmatprep.mubr.bf16.mxu0 0
      %488 = vmatmul.mubr.bf16.gmra.mrb[0].mxu0 %v344
      %v489 = vpop.f32.mrb[0].mxu0
      %v490 = vadd.f32 %v215, %v489
      %v491 = vpop.f32.mrb[0].mxu0
      %v492 = vpop.f32.mrb[0].mxu0
      %v493 = vadd.f32 %v215, %v492
      %v494 = vpop.f32.mrb[0].mxu0
      %495 = vmatprep.mubr.bf16.mxu0 0
      %496 = vmatmul.mubr.bf16.gmra.mrb[0].mxu0 %v347
      %v497 = vpop.f32.mrb[0].mxu0
      %v498 = vadd.f32 %v215, %v497
      %v499 = vpop.f32.mrb[0].mxu0
      %v500 = vpop.f32.mrb[0].mxu0
      %v501 = vadd.f32 %v215, %v500
      %v502 = vpop.f32.mrb[0].mxu0
      %503 = vmatprep.mubr.bf16.mxu0 0
      %504 = vmatmul.mubr.bf16.gmra.mrb[0].mxu0 %v350
      %v505 = vpop.f32.mrb[0].mxu0
      %v506 = vadd.f32 %v215, %v505
      %v507 = vpop.f32.mrb[0].mxu0
      %v508 = vpop.f32.mrb[0].mxu0
      %v509 = vadd.f32 %v215, %v508
      %v510 = vpop.f32.mrb[0].mxu0
      %511 = vmatprep.mubr.bf16.mxu0 0
      %512 = vmatmul.mubr.bf16.gmra.mrb[0].mxu0 %v353
      %v513 = vpop.f32.mrb[0].mxu0
      %v514 = vadd.f32 %v215, %v513
      %v515 = vpop.f32.mrb[0].mxu0
      %v516 = vpop.f32.mrb[0].mxu0
      %v517 = vadd.f32 %v215, %v516
      %v518 = vpop.f32.mrb[0].mxu0
      %519 = vdwg.mxu0
      %v520 = vmul.f32 %v394, 0.5
      %v521 = vmul.f32 %v397, 0.5
      %v522 = vmul.f32 %v402, 0.5
      %v523 = vmul.f32 %v405, 0.5
      %v524 = vmul.f32 %v410, 0.5
      %v525 = vmul.f32 %v413, 0.5
      %v526 = vmul.f32 %v418, 0.5
      %v527 = vmul.f32 %v421, 0.5
      %v528 = vmul.f32 %v426, 0.5
      %v529 = vmul.f32 %v429, 0.5
      %v530 = vmul.f32 %v434, 0.5
      %v531 = vmul.f32 %v437, 0.5
      %v532 = vmul.f32 %v442, 0.5
      %v533 = vmul.f32 %v445, 0.5
      %v534 = vmul.f32 %v450, 0.5
      %v535 = vmul.f32 %v453, 0.5
      %v536 = vmul.f32 %v458, 0.5
      %v537 = vmul.f32 %v461, 0.5
      %v538 = vmul.f32 %v466, 0.5
      %v539 = vmul.f32 %v469, 0.5
      %v540 = vmul.f32 %v474, 0.5
      %v541 = vmul.f32 %v477, 0.5
      %v542 = vmul.f32 %v482, 0.5
      %v543 = vmul.f32 %v485, 0.5
      %v544 = vmul.f32 %v490, 0.5
      %v545 = vmul.f32 %v493, 0.5
      %v546 = vmul.f32 %v498, 0.5
      %v547 = vmul.f32 %v501, 0.5
      %v548 = vmul.f32 %v506, 0.5
      %v549 = vmul.f32 %v509, 0.5
      %v550 = vmul.f32 %v514, 0.5
      %v551 = vmul.f32 %v517, 0.5
      %v552 = vtanh.pop %v520
      %v553 = vtanh.pop %v521
      %v554 = vtanh.pop %v522
      %v555 = vtanh.pop %v523
      %v556 = vtanh.pop %v524
      %v557 = vtanh.pop %v525
      %v558 = vtanh.pop %v526
      %v559 = vtanh.pop %v527
      %v560 = vtanh.pop %v528
      %v561 = vtanh.pop %v529
      %v562 = vtanh.pop %v530
      %v563 = vtanh.pop %v531
      %v564 = vtanh.pop %v532
      %v565 = vtanh.pop %v533
      %v566 = vtanh.pop %v534
      %v567 = vtanh.pop %v535
      %v568 = vtanh.pop %v536
      %v569 = vtanh.pop %v537
      %v570 = vtanh.pop %v538
      %v571 = vtanh.pop %v539
      %v572 = vtanh.pop %v540
      %v573 = vtanh.pop %v541
      %v574 = vtanh.pop %v542
      %v575 = vtanh.pop %v543
      %v576 = vtanh.pop %v544
      %v577 = vtanh.pop %v545
      %v578 = vtanh.pop %v546
      %v579 = vtanh.pop %v547
      %v580 = vtanh.pop %v548
      %v581 = vtanh.pop %v549
      %v582 = vtanh.pop %v550
      %v583 = vtanh.pop %v551
      %v584 = vadd.f32 %v552, 1.0
      %v585 = vadd.f32 %v553, 1.0
      %v586 = vadd.f32 %v554, 1.0
      %v587 = vadd.f32 %v555, 1.0
      %v588 = vadd.f32 %v556, 1.0
      %v589 = vadd.f32 %v557, 1.0
      %v590 = vadd.f32 %v558, 1.0
      %v591 = vadd.f32 %v559, 1.0
      %v592 = vadd.f32 %v560, 1.0
      %v593 = vadd.f32 %v561, 1.0
      %v594 = vadd.f32 %v562, 1.0
      %v595 = vadd.f32 %v563, 1.0
      %v596 = vadd.f32 %v564, 1.0
      %v597 = vadd.f32 %v565, 1.0
      %v598 = vadd.f32 %v566, 1.0
      %v599 = vadd.f32 %v567, 1.0
      %v600 = vadd.f32 %v568, 1.0
      %v601 = vadd.f32 %v569, 1.0
      %v602 = vadd.f32 %v570, 1.0
      %v603 = vadd.f32 %v571, 1.0
      %v604 = vadd.f32 %v572, 1.0
      %v605 = vadd.f32 %v573, 1.0
      %v606 = vadd.f32 %v574, 1.0
      %v607 = vadd.f32 %v575, 1.0
      %v608 = vadd.f32 %v576, 1.0
      %v609 = vadd.f32 %v577, 1.0
      %v610 = vadd.f32 %v578, 1.0
      %v611 = vadd.f32 %v579, 1.0
      %v612 = vadd.f32 %v580, 1.0
      %v613 = vadd.f32 %v581, 1.0
      %v614 = vadd.f32 %v582, 1.0
      %v615 = vadd.f32 %v583, 1.0
      %v616 = vmul.f32 %v584, 0.5
      %v617 = vmul.f32 %v585, 0.5
      %v618 = vmul.f32 %v586, 0.5
      %v619 = vmul.f32 %v587, 0.5
      %v620 = vmul.f32 %v588, 0.5
      %v621 = vmul.f32 %v589, 0.5
      %v622 = vmul.f32 %v590, 0.5
      %v623 = vmul.f32 %v591, 0.5
      %v624 = vmul.f32 %v592, 0.5
      %v625 = vmul.f32 %v593, 0.5
      %v626 = vmul.f32 %v594, 0.5
      %v627 = vmul.f32 %v595, 0.5
      %v628 = vmul.f32 %v596, 0.5
      %v629 = vmul.f32 %v597, 0.5
      %v630 = vmul.f32 %v598, 0.5
      %v631 = vmul.f32 %v599, 0.5
      %v632 = vmul.f32 %v600, 0.5
      %v633 = vmul.f32 %v601, 0.5
      %v634 = vmul.f32 %v602, 0.5
      %v635 = vmul.f32 %v603, 0.5
      %v636 = vmul.f32 %v604, 0.5
      %v637 = vmul.f32 %v605, 0.5
      %v638 = vmul.f32 %v606, 0.5
      %v639 = vmul.f32 %v607, 0.5
      %v640 = vmul.f32 %v608, 0.5
      %v641 = vmul.f32 %v609, 0.5
      %v642 = vmul.f32 %v610, 0.5
      %v643 = vmul.f32 %v611, 0.5
      %v644 = vmul.f32 %v612, 0.5
      %v645 = vmul.f32 %v613, 0.5
      %v646 = vmul.f32 %v614, 0.5
      %v647 = vmul.f32 %v615, 0.5
      %v648 = vmul.f32 %v394, %v616
      %v649 = vmul.f32 %v397, %v617
      %v650 = vmul.f32 %v402, %v618
      %v651 = vmul.f32 %v405, %v619
      %v652 = vmul.f32 %v410, %v620
      %v653 = vmul.f32 %v413, %v621
      %v654 = vmul.f32 %v418, %v622
      %v655 = vmul.f32 %v421, %v623
      %v656 = vmul.f32 %v426, %v624
      %v657 = vmul.f32 %v429, %v625
      %v658 = vmul.f32 %v434, %v626
      %v659 = vmul.f32 %v437, %v627
      %v660 = vmul.f32 %v442, %v628
      %v661 = vmul.f32 %v445, %v629
      %v662 = vmul.f32 %v450, %v630
      %v663 = vmul.f32 %v453, %v631
      %v664 = vmul.f32 %v458, %v632
      %v665 = vmul.f32 %v461, %v633
      %v666 = vmul.f32 %v466, %v634
      %v667 = vmul.f32 %v469, %v635
      %v668 = vmul.f32 %v474, %v636
      %v669 = vmul.f32 %v477, %v637
      %v670 = vmul.f32 %v482, %v638
      %v671 = vmul.f32 %v485, %v639
      %v672 = vmul.f32 %v490, %v640
      %v673 = vmul.f32 %v493, %v641
      %v674 = vmul.f32 %v498, %v642
      %v675 = vmul.f32 %v501, %v643
      %v676 = vmul.f32 %v506, %v644
      %v677 = vmul.f32 %v509, %v645
      %v678 = vmul.f32 %v514, %v646
      %v679 = vmul.f32 %v517, %v647
      %v680 = vpack.c.bf16 %v649, %v648
      %v681 = vpack.c.bf16 %v651, %v650
      %v682 = vpack.c.bf16 %v653, %v652
      %v683 = vpack.c.bf16 %v655, %v654
      %v684 = vpack.c.bf16 %v657, %v656
      %v685 = vpack.c.bf16 %v659, %v658
      %v686 = vpack.c.bf16 %v661, %v660
      %v687 = vpack.c.bf16 %v663, %v662
      %v688 = vpack.c.bf16 %v665, %v664
      %v689 = vpack.c.bf16 %v667, %v666
      %v690 = vpack.c.bf16 %v669, %v668
      %v691 = vpack.c.bf16 %v671, %v670
      %v692 = vpack.c.bf16 %v673, %v672
      %v693 = vpack.c.bf16 %v675, %v674
      %v694 = vpack.c.bf16 %v677, %v676
      %v695 = vpack.c.bf16 %v679, %v678
      %v712 = vunpack.c.l.b16 %v680
      %v713 = vunpack.c.h.b16 %v680
      %v714 = vunpack.c.l.b16 %v681
      %v715 = vunpack.c.h.b16 %v681
      %v716 = vunpack.c.l.b16 %v682
      %v717 = vunpack.c.h.b16 %v682
      %v718 = vunpack.c.l.b16 %v683
      %v719 = vunpack.c.h.b16 %v683
      %v720 = vunpack.c.l.b16 %v684
      %v721 = vunpack.c.h.b16 %v684
      %v722 = vunpack.c.l.b16 %v685
      %v723 = vunpack.c.h.b16 %v685
      %v724 = vunpack.c.l.b16 %v686
      %v725 = vunpack.c.h.b16 %v686
      %v726 = vunpack.c.l.b16 %v687
      %v727 = vunpack.c.h.b16 %v687
      %v728 = vunpack.c.l.b16 %v688
      %v729 = vunpack.c.h.b16 %v688
      %v730 = vunpack.c.l.b16 %v689
      %v731 = vunpack.c.h.b16 %v689
      %v732 = vunpack.c.l.b16 %v690
      %v733 = vunpack.c.h.b16 %v690
      %v734 = vunpack.c.l.b16 %v691
      %v735 = vunpack.c.h.b16 %v691
      %v736 = vunpack.c.l.b16 %v692
      %v737 = vunpack.c.h.b16 %v692
      %v738 = vunpack.c.l.b16 %v693
      %v739 = vunpack.c.h.b16 %v693
      %v740 = vunpack.c.l.b16 %v694
      %v741 = vunpack.c.h.b16 %v694
      %v742 = vunpack.c.l.b16 %v695
      %v743 = vunpack.c.h.b16 %v695
      %v744 = vpack.c.b16 %v712, %v712
      %v745 = vpack.c.b16 %v713, %v713
      %v746 = vpack.c.b16 %v714, %v714
      %v747 = vpack.c.b16 %v715, %v715
      %v748 = vpack.c.b16 %v716, %v716
      %v749 = vpack.c.b16 %v717, %v717
      %v750 = vpack.c.b16 %v718, %v718
      %v751 = vpack.c.b16 %v719, %v719
      %v752 = vpack.c.b16 %v720, %v720
      %v753 = vpack.c.b16 %v721, %v721
      %v754 = vpack.c.b16 %v722, %v722
      %v755 = vpack.c.b16 %v723, %v723
      %v756 = vpack.c.b16 %v724, %v724
      %v757 = vpack.c.b16 %v725, %v725
      %v758 = vpack.c.b16 %v726, %v726
      %v759 = vpack.c.b16 %v727, %v727
      %v760 = vpack.c.b16 %v728, %v728
      %v761 = vpack.c.b16 %v729, %v729
      %v762 = vpack.c.b16 %v730, %v730
      %v763 = vpack.c.b16 %v731, %v731
      %v764 = vpack.c.b16 %v732, %v732
      %v765 = vpack.c.b16 %v733, %v733
      %v766 = vpack.c.b16 %v734, %v734
      %v767 = vpack.c.b16 %v735, %v735
      %v768 = vpack.c.b16 %v736, %v736
      %v769 = vpack.c.b16 %v737, %v737
      %v770 = vpack.c.b16 %v738, %v738
      %v771 = vpack.c.b16 %v739, %v739
      %v772 = vpack.c.b16 %v740, %v740
      %v773 = vpack.c.b16 %v741, %v741
      %v774 = vpack.c.b16 %v742, %v742
      %v775 = vpack.c.b16 %v743, %v743
      %808 = vst [vmem:[%s172] sm:$0xf] %v744
      %809 = vst [vmem:[%s172 + $0x4] sm:$0xf] %v745
      %810 = vst [vmem:[%s172 + $0x8] sm:$0xf] %v746
      %811 = vst [vmem:[%s172 + $0xc] sm:$0xf] %v747
      %812 = vst [vmem:[%s172 + $0x10] sm:$0xf] %v748
      %813 = vst [vmem:[%s172 + $0x14] sm:$0xf] %v749
      %814 = vst [vmem:[%s172 + $0x18] sm:$0xf] %v750
      %815 = vst [vmem:[%s172 + $0x1c] sm:$0xf] %v751
      %816 = vst [vmem:[%s172 + $0x20] sm:$0xf] %v752
      %817 = vst [vmem:[%s172 + $0x24] sm:$0xf] %v753
      %818 = vst [vmem:[%s172 + $0x28] sm:$0xf] %v754
      %819 = vst [vmem:[%s172 + $0x2c] sm:$0xf] %v755
      %820 = vst [vmem:[%s172 + $0x30] sm:$0xf] %v756
      %821 = vst [vmem:[%s172 + $0x34] sm:$0xf] %v757
      %822 = vst [vmem:[%s172 + $0x38] sm:$0xf] %v758
      %823 = vst [vmem:[%s172 + $0x3c] sm:$0xf] %v759
      %824 = vst [vmem:[%s172 + $0x40] sm:$0xf] %v760
      %825 = vst [vmem:[%s172 + $0x44] sm:$0xf] %v761
      %826 = vst [vmem:[%s172 + $0x48] sm:$0xf] %v762
      %827 = vst [vmem:[%s172 + $0x4c] sm:$0xf] %v763
      %828 = vst [vmem:[%s172 + $0x50] sm:$0xf] %v764
      %829 = vst [vmem:[%s172 + $0x54] sm:$0xf] %v765
      %830 = vst [vmem:[%s172 + $0x58] sm:$0xf] %v766
      %831 = vst [vmem:[%s172 + $0x5c] sm:$0xf] %v767
      %832 = vst [vmem:[%s172 + $0x60] sm:$0xf] %v768
      %833 = vst [vmem:[%s172 + $0x64] sm:$0xf] %v769
      %834 = vst [vmem:[%s172 + $0x68] sm:$0xf] %v770
      %835 = vst [vmem:[%s172 + $0x6c] sm:$0xf] %v771
      %836 = vst [vmem:[%s172 + $0x70] sm:$0xf] %v772
      %837 = vst [vmem:[%s172 + $0x74] sm:$0xf] %v773
      %838 = vst [vmem:[%s172 + $0x78] sm:$0xf] %v774
      %839 = vst [vmem:[%s172 + $0x7c] sm:$0xf] %v775
      %s840 = smul.u32 32, %s14
      %p841 = scmp.lt.s32.totalorder %s840, 63
      %s842 = scalar_select %p841, %s840, 63
      %s843 = smul.addr %s842, 4
      %s844 = scalar_lea.vmem %s3, %s843
      // Predicated region
      $region33: #{ldconv_forward.1} parent=31 // pred_check
        %p845 = pneg %p100
      $region34: #{ldconv_forward.1} parent=31 // pred_check_branch
        %847 = sbr.rel (%p845) target = $region36
      $region35: #{ldconv_forward.1} parent=31 // pred_region
        %s848 = smul.u32 32, %s14
      $region36: #{ldconv_forward.1} parent=31 // pred_fallthru
        _
    $region32: #{ldconv_forward.1} parent=5 // pred_fallthru
      _
    %p849 = scmp.le.s32.totalorder 2, %s9
    // Predicated region
    $region37: #{ldconv_forward.1} parent=5 // pred_check
      %p850 = pneg %p849
    $region38: #{ldconv_forward.1} parent=5 // pred_check_branch
      %852 = sbr.rel (%p850) target = $region40
    $region39: #{ldconv_forward.1} parent=5 // pred_region
      %s853 = ssub.s32 %s9, 2
      // Predicated region
      $region41: #{ldconv_forward.1} parent=39 // pred_check
        %p854 = pneg %p106
      $region42: #{ldconv_forward.1} parent=39 // pred_check_branch
        %856 = sbr.rel (%p854) target = $region44
      $region43: #{ldconv_forward.1} parent=39 // pred_region
        %s857 = smul.u32 32, %s15
        %p858 = scmp.lt.s32.totalorder %s857, 63
        %s859 = scalar_select %p858, %s857, 63
        %s860 = smul.addr %s859, 4
        %s861 = scalar_lea.vmem %s3, %s860
      $region44: #{ldconv_forward.1} parent=39 // pred_fallthru
        _
    $region40: #{ldconv_forward.1} parent=5 // pred_fallthru
      _
  $region6: #{ldconv_forward.1} parent=0 // loop_footer
    %s13 = sadd.s32 1, %s9
  $region7: #{ldconv_forward.1} parent=0 // loop_footer_branch
    %8 = sbr.rel target = $region3
  $region8: #{ldconv_forward.1} parent=0 // loop_exit
    _

</llo_original>
